<compile_context>
chip_gen: v7x
topology: tpu7x:2x2x1
jax: 0.10.0
libtpu: 0.0.40
codegen_flags: <defaults>
</compile_context>

<pallas_src>
import jax
import jax.numpy as jnp
from jax.experimental import pallas as pl
from jax.experimental.pallas import tpu as pltpu

N_NODES = 8      # graph nodes == batch size (required by torch cat in MLPNet.forward)
HIDDEN = 8       # hidden_features; forced to 8 by Linear(hidden*3, hidden) + z.repeat(1, 8)
GRAPH_OUT = 5    # EmbedProfiles out_feats (matches nn.Linear(5, 1) attention head)
NUM_USERS = 16
NUM_HIDDEN_LAYERS = 2


def mlpnet_kernel(a_ref, xin_ref, users_ref, emb_ref, w_ref, b_ref, out_ref, att_ref):
    f32 = jnp.float32
    a = a_ref[...]        # (N, N)  D^-1/2 A D^-1/2
    xin = xin_ref[...]    # (N, 2)  col 0 = times, col 1 = node feature
    wp = w_ref[...]       # (11, 8, 8) packed weights (zero-padded to 8x8)
    bp = b_ref[...]       # (9, 8)     packed biases  (zero-padded to 8)
    n = a.shape[0]

    relu = lambda v: jnp.maximum(v, 0.0)
    dot = lambda x, w: jnp.dot(x, w, preferred_element_type=f32)

    # ---------------- EmbedProfiles: GraphConv x2 + (degenerate) attention ----------------
    feat = xin[:, 1:2]                                             # (N, 1)
    # GraphConv1: relu(A_hat @ (X @ W1) + b1); K=1 contraction as a VPU outer product
    h1 = relu(dot(a, feat * wp[0][0:1, :]) + bp[0:1, :])           # (N, 8)
    # Dropout(0.5): identity (eval mode).
    # TODO(synk): training-mode dropout via pltpu.prng_seed / prng_random_bits if ever needed.
    # GraphConv2: relu(A_hat @ (H1 @ W2) + b2); W2 (8,5) zero-padded to (8,8) -> cols 5:8 stay 0
    h2 = relu(dot(a, dot(h1, wp[1])) + bp[1:2, :])                 # (N, 8), real cols 0:5
    # att = softmax(dim=1)(Linear(5,1)(h2)) over a length-1 axis is exactly 1.0, so the
    # attention Linear never affects the outputs -> dead branch removed (bit-identical).
    att = jnp.ones((n, 1), f32)
    # z = mean(att * h2, dim=1) over the 5 real feature columns (pad cols are exactly 0)
    z_node = jnp.sum(h2, axis=1, keepdims=True) * (1.0 / GRAPH_OUT)  # (N, 1)

    # ---------------- MLPNet graph pooling ----------------
    # torch: z = mean(att * z, axis=1) with att (N,1), z (N,) -> (N,N) broadcast with identical
    # rows -> every entry equals mean(z); expanded_z = that scalar tiled to (N, 8).
    s = jnp.sum(z_node, axis=0, keepdims=True) * (1.0 / n)           # (1, 1)
    z_exp = jnp.zeros((n, HIDDEN), f32) + s                          # (N, 8)

    # ---------------- embed_times: Linear(1,H)+ReLU, Linear(H,H)+ReLU ----------------
    times = xin[:, 0:1]                                              # (B, 1)
    t = relu(times * wp[2][0:1, :] + bp[2:3, :])                     # K=1 on the VPU
    t = relu(dot(t, wp[3]) + bp[3:4, :])

    # ---------------- embed_users: Embedding+ReLU, Linear(H,H)+ReLU ----------------
    ids = users_ref[...]                                             # (B, 1) int32
    onehot = (jax.lax.broadcasted_iota(jnp.int32, (n, NUM_USERS), 1) == ids).astype(f32)
    u = relu(dot(onehot, emb_ref[...]))                              # embedding gather as one-hot matmul
    u = relu(dot(u, wp[4]) + bp[4:5, :])                             # (torch squeeze(dim=1) is a no-op here)

    # ---------------- net: Linear(3H,H)+ReLU (split across the concat), 2x Linear(H,H)+ReLU,
    # ----------------      Linear(H,1)+Sigmoid
    c = relu(dot(t, wp[5]) + dot(u, wp[6]) + dot(z_exp, wp[7]) + bp[5:6, :])
    c = relu(dot(c, wp[8]) + bp[6:7, :])
    c = relu(dot(c, wp[9]) + bp[7:8, :])
    o = dot(c, wp[10]) + bp[8:9, :]                                  # col 0 is the real Linear(8,1) output
    o = 1.0 / (1.0 + jnp.exp(-o))                                    # sigmoid (outermost_linear='sigmoid')

    out_ref[...] = o[:, 0:1]
    att_ref[...] = att


def mlpnet_forward(times, users, a_hat, features, packed):
    """Full MLPNet.forward (use_graph=True). Returns (output (N,1), att (N,1))."""
    w_pack, b_pack, emb = packed
    n = a_hat.shape[0]
    # torch: features.view(features.size(-1), -1)  (a raw reshape, reproduced exactly)
    feat = jnp.reshape(features, (features.shape[-1], -1)).astype(jnp.float32)   # (N, 1)
    assert feat.shape == (n, 1) and times.shape[0] == n, "MLPNet cat requires batch == n_nodes, in_feats == 1"
    xin = jnp.concatenate([times.astype(jnp.float32), feat], axis=1)             # (N, 2): one DMA instead of two

    vmem = pl.BlockSpec(memory_space=pltpu.MemorySpace.VMEM)
    out, att = pl.pallas_call(
        mlpnet_kernel,
        out_shape=(jax.ShapeDtypeStruct((n, 1), jnp.float32),
                   jax.ShapeDtypeStruct((n, 1), jnp.float32)),
        in_specs=[vmem] * 6,
        out_specs=(vmem, vmem),
    )(a_hat.astype(jnp.float32), xin, users.astype(jnp.int32), emb, w_pack, b_pack)
    return out, att


# ------------------------------ parameter handling ------------------------------

def make_params(key):
    """Synthetic weights in math (in, out) layout; torch nn.Linear stores the transpose."""
    ks = jax.random.split(key, 24)
    def w(i, fi, fo):
        return jax.random.normal(ks[i], (fi, fo), jnp.float32) / jnp.sqrt(fi)
    def b(i, fo):
        return 0.1 * jax.random.normal(ks[i], (fo,), jnp.float32)
    return {
        # EmbedProfiles(1, HIDDEN, 5).  linear_att / softmax(dim=1) are provably inert -> not materialized.
        "w_g1": w(0, 1, HIDDEN),           "b_g1": b(1, HIDDEN),
        "w_g2": w(2, HIDDEN, GRAPH_OUT),   "b_g2": b(3, GRAPH_OUT),
        # embed_times
        "w_t0": w(4, 1, HIDDEN),           "b_t0": b(5, HIDDEN),
        "w_t1": w(6, HIDDEN, HIDDEN),      "b_t1": b(7, HIDDEN),
        # embed_users
        "emb":  jax.random.normal(ks[8], (NUM_USERS, HIDDEN), jnp.float32),
        "w_u1": w(9, HIDDEN, HIDDEN),      "b_u1": b(10, HIDDEN),
        # net
        "w_n0": w(11, 3 * HIDDEN, HIDDEN), "b_n0": b(12, HIDDEN),
        "w_n1": w(13, HIDDEN, HIDDEN),     "b_n1": b(14, HIDDEN),
        "w_n2": w(15, HIDDEN, HIDDEN),     "b_n2": b(16, HIDDEN),
        "w_n3": w(17, HIDDEN, 1),          "b_n3": b(18, 1),
    }


def pack_params(p):
    """Consolidate all tiny tensors into one (11,8,8) weight slab + one (9,8) bias slab."""
    def pad2(w):
        w = jnp.asarray(w, jnp.float32)
        return jnp.pad(w, ((0, HIDDEN - w.shape[0]), (0, HIDDEN - w.shape[1])))
    def pad1(v):
        v = jnp.asarray(v, jnp.float32).reshape(-1)
        return jnp.pad(v, (0, HIDDEN - v.shape[0]))
    w_pack = jnp.stack([
        pad2(p["w_g1"]),                       # 0  GraphConv1 (1,8)  - row 0 used
        pad2(p["w_g2"]),                       # 1  GraphConv2 (8,5)  - cols 0:5 used
        pad2(p["w_t0"]),                       # 2  embed_times Linear(1,8) - row 0 used
        pad2(p["w_t1"]),                       # 3  embed_times Linear(8,8)
        pad2(p["w_u1"]),                       # 4  embed_users Linear(8,8)
        pad2(p["w_n0"][0:HIDDEN]),             # 5  net[0] rows for times embedding
        pad2(p["w_n0"][HIDDEN:2 * HIDDEN]),    # 6  net[0] rows for users embedding
        pad2(p["w_n0"][2 * HIDDEN:3 * HIDDEN]),# 7  net[0] rows for expanded_z
        pad2(p["w_n1"]),                       # 8
        pad2(p["w_n2"]),                       # 9
        pad2(p["w_n3"]),                       # 10 net[-1] Linear(8,1) - col 0 used
    ])
    b_pack = jnp.stack([
        pad1(p["b_g1"]), pad1(p["b_g2"]), pad1(p["b_t0"]), pad1(p["b_t1"]), pad1(p["b_u1"]),
        pad1(p["b_n0"]), pad1(p["b_n1"]), pad1(p["b_n2"]), pad1(p["b_n3"]),
    ])
    return w_pack, b_pack, jnp.asarray(p["emb"], jnp.float32)


def make_normalized_adjacency(key, n_nodes):
    """Deterministic symmetric adjacency (ring + random edges), no self loops, D^-1/2 A D^-1/2."""
    r = jax.random.uniform(key, (n_nodes, n_nodes))
    adj = (r + r.T > 1.2).astype(jnp.float32)
    ring = (jnp.eye(n_nodes, k=1) + jnp.eye(n_nodes, k=-1)
            + jnp.eye(n_nodes, k=n_nodes - 1) + jnp.eye(n_nodes, k=-(n_nodes - 1)))
    adj = jnp.clip(adj + ring, 0.0, 1.0) * (1.0 - jnp.eye(n_nodes))
    d_inv_sqrt = 1.0 / jnp.sqrt(jnp.sum(adj, axis=1))
    return adj * d_inv_sqrt[:, None] * d_inv_sqrt[None, :]


# ------------------------------ pure-JAX reference ------------------------------

def mlpnet_reference(times, users, a_hat, features, p):
    f32 = jnp.float32
    feat = jnp.reshape(features, (features.shape[-1], -1)).astype(f32)      # (N, 1)
    # EmbedProfiles
    h1 = jax.nn.relu(a_hat @ (feat @ p["w_g1"]) + p["b_g1"])
    h2 = jax.nn.relu(a_hat @ (h1 @ p["w_g2"]) + p["b_g2"])                  # (N, 5)
    att = jnp.ones((h2.shape[0], 1), f32)                                   # softmax(dim=1) of (N,1) logits
    z = jnp.mean(att * h2, axis=1)                                          # (N,)
    # MLPNet graph pooling
    zz = jnp.mean(att * z, axis=1)                                          # (N,1)*(N,) -> (N,N) -> (N,)
    expanded_z = jnp.tile(zz[:, None], (1, 8))                              # (N, 8)
    # embed_times / embed_users
    x = jax.nn.relu(times.astype(f32) @ p["w_t0"] + p["b_t0"])
    x = jax.nn.relu(x @ p["w_t1"] + p["b_t1"])
    y = jax.nn.relu(p["emb"][users[:, 0]])
    y = jax.nn.relu(y @ p["w_u1"] + p["b_u1"])
    # net
    c = jnp.concatenate([x, y, expanded_z], axis=-1)
    c = jax.nn.relu(c @ p["w_n0"] + p["b_n0"])
    c = jax.nn.relu(c @ p["w_n1"] + p["b_n1"])
    c = jax.nn.relu(c @ p["w_n2"] + p["b_n2"])
    out = jax.nn.sigmoid(c @ p["w_n3"] + p["b_n3"])
    return out, att


if __name__ == "__main__":
    key = jax.random.PRNGKey(0)
    k_t, k_u, k_f, k_a, k_p = jax.random.split(key, 5)

    times = jax.random.normal(k_t, (N_NODES, 1), jnp.float32)
    users = jax.random.randint(k_u, (N_NODES, 1), 0, NUM_USERS, jnp.int32)
    features = jax.random.normal(k_f, (N_NODES,), jnp.float32)   # graph.ndata['feat'], one scalar per node
    a_hat = make_normalized_adjacency(k_a, N_NODES)
    params = make_params(k_p)
    packed = pack_params(params)

    out, att = mlpnet_forward(times, users, a_hat, features, packed)
    jax.block_until_ready((out, att))
    assert out.shape == (N_NODES, 1) and att.shape == (N_NODES, 1)

    with jax.default_matmul_precision("float32"):
        ref_out, ref_att = mlpnet_reference(times, users, a_hat, features, params)
    assert jnp.allclose(out, ref_out, atol=1e-2, rtol=1e-2)
    assert jnp.allclose(att, ref_att)
    print("KERNEL_OK")
</pallas_src>

<mosaic_0001>
module attributes {stable_mosaic.version = 11 : i64} {
  func.func @mlpnet_kernel(%arg0: memref<8x8xf32, #tpu.memory_space<vmem>>, %arg1: memref<8x2xf32, #tpu.memory_space<vmem>>, %arg2: memref<8x1xi32, #tpu.memory_space<vmem>>, %arg3: memref<16x8xf32, #tpu.memory_space<vmem>>, %arg4: memref<11x8x8xf32, #tpu.memory_space<vmem>>, %arg5: memref<9x8xf32, #tpu.memory_space<vmem>>, %arg6: memref<8x1xf32, #tpu.memory_space<vmem>>, %arg7: memref<8x1xf32, #tpu.memory_space<vmem>>) attributes {dimension_semantics = [], scalar_prefetch = 0 : i64, scratch_operands = 0 : i64, tpu.core_type = #tpu.core_type<tc>} {
    %c0 = arith.constant 0 : index
    %c0_0 = arith.constant 0 : index
    %0 = vector.load %arg0[%c0, %c0_0] : memref<8x8xf32, #tpu.memory_space<vmem>>, vector<8x8xf32>
    %c0_1 = arith.constant 0 : index
    %c0_2 = arith.constant 0 : index
    %1 = vector.load %arg1[%c0_1, %c0_2] : memref<8x2xf32, #tpu.memory_space<vmem>>, vector<8x2xf32>
    %c0_3 = arith.constant 0 : index
    %c0_4 = arith.constant 0 : index
    %c0_5 = arith.constant 0 : index
    %2 = vector.load %arg4[%c0_3, %c0_4, %c0_5] : memref<11x8x8xf32, #tpu.memory_space<vmem>>, vector<11x8x8xf32>
    %c0_6 = arith.constant 0 : index
    %c0_7 = arith.constant 0 : index
    %3 = vector.load %arg5[%c0_6, %c0_7] : memref<9x8xf32, #tpu.memory_space<vmem>>, vector<9x8xf32>
    %4 = vector.extract_strided_slice %1 {offsets = [0, 1], sizes = [8, 1], strides = [1, 1]} : vector<8x2xf32> to vector<8x1xf32>
    %5 = vector.extract_strided_slice %2 {offsets = [0, 0, 0], sizes = [1, 8, 8], strides = [1, 1, 1]} : vector<11x8x8xf32> to vector<1x8x8xf32>
    %6 = vector.shape_cast %5 : vector<1x8x8xf32> to vector<8x8xf32>
    %7 = vector.extract_strided_slice %6 {offsets = [0, 0], sizes = [1, 8], strides = [1, 1]} : vector<8x8xf32> to vector<1x8xf32>
    %8 = vector.broadcast %4 : vector<8x1xf32> to vector<8x8xf32>
    %9 = vector.broadcast %7 : vector<1x8xf32> to vector<8x8xf32>
    %10 = arith.mulf %8, %9 : vector<8x8xf32>
    %cst = arith.constant dense<0.000000e+00> : vector<8x8xf32>
    %11 = tpu.matmul %0, %10, %cst {dimension_numbers = #tpu.dot_dimension_numbers<[1], [0], [0], [1], [0, 0, 1, 1], [], []>} : vector<8x8xf32>, vector<8x8xf32>, vector<8x8xf32> -> vector<8x8xf32>
    %12 = vector.extract_strided_slice %3 {offsets = [0, 0], sizes = [1, 8], strides = [1, 1]} : vector<9x8xf32> to vector<1x8xf32>
    %13 = vector.broadcast %12 : vector<1x8xf32> to vector<8x8xf32>
    %14 = arith.addf %11, %13 : vector<8x8xf32>
    %cst_8 = arith.constant 0.000000e+00 : f32
    %15 = vector.broadcast %cst_8 : f32 to vector<8x8xf32>
    %16 = arith.maximumf %14, %15 : vector<8x8xf32>
    %17 = vector.extract_strided_slice %2 {offsets = [1, 0, 0], sizes = [1, 8, 8], strides = [1, 1, 1]} : vector<11x8x8xf32> to vector<1x8x8xf32>
    %18 = vector.shape_cast %17 : vector<1x8x8xf32> to vector<8x8xf32>
    %cst_9 = arith.constant dense<0.000000e+00> : vector<8x8xf32>
    %19 = tpu.matmul %16, %18, %cst_9 {dimension_numbers = #tpu.dot_dimension_numbers<[1], [0], [0], [1], [0, 0, 1, 1], [], []>} : vector<8x8xf32>, vector<8x8xf32>, vector<8x8xf32> -> vector<8x8xf32>
    %cst_10 = arith.constant dense<0.000000e+00> : vector<8x8xf32>
    %20 = tpu.matmul %0, %19, %cst_10 {dimension_numbers = #tpu.dot_dimension_numbers<[1], [0], [0], [1], [0, 0, 1, 1], [], []>} : vector<8x8xf32>, vector<8x8xf32>, vector<8x8xf32> -> vector<8x8xf32>
    %21 = vector.extract_strided_slice %3 {offsets = [1, 0], sizes = [1, 8], strides = [1, 1]} : vector<9x8xf32> to vector<1x8xf32>
    %22 = vector.broadcast %21 : vector<1x8xf32> to vector<8x8xf32>
    %23 = arith.addf %20, %22 : vector<8x8xf32>
    %cst_11 = arith.constant 0.000000e+00 : f32
    %24 = vector.broadcast %cst_11 : f32 to vector<8x8xf32>
    %25 = arith.maximumf %23, %24 : vector<8x8xf32>
    %cst_12 = arith.constant 1.000000e+00 : f32
    %26 = vector.broadcast %cst_12 : f32 to vector<8x1xf32>
    %cst_13 = arith.constant dense<0.000000e+00> : vector<8xf32>
    %27 = vector.multi_reduction <add>, %25, %cst_13 [1] : vector<8x8xf32> to vector<8xf32>
    %28 = vector.shape_cast %27 : vector<8xf32> to vector<8x1xf32>
    %cst_14 = arith.constant 2.000000e-01 : f32
    %29 = vector.broadcast %cst_14 : f32 to vector<8x1xf32>
    %30 = arith.mulf %28, %29 : vector<8x1xf32>
    %cst_15 = arith.constant dense<0.000000e+00> : vector<1xf32>
    %31 = vector.multi_reduction <add>, %30, %cst_15 [0] : vector<8x1xf32> to vector<1xf32>
    %32 = vector.shape_cast %31 : vector<1xf32> to vector<1x1xf32>
    %cst_16 = arith.constant 1.250000e-01 : f32
    %33 = vector.broadcast %cst_16 : f32 to vector<1x1xf32>
    %34 = arith.mulf %32, %33 : vector<1x1xf32>
    %cst_17 = arith.constant 0.000000e+00 : f32
    %35 = vector.broadcast %cst_17 : f32 to vector<8x8xf32>
    %36 = vector.broadcast %34 : vector<1x1xf32> to vector<8x8xf32>
    %37 = arith.addf %35, %36 : vector<8x8xf32>
    %38 = vector.extract_strided_slice %1 {offsets = [0, 0], sizes = [8, 1], strides = [1, 1]} : vector<8x2xf32> to vector<8x1xf32>
    %39 = vector.extract_strided_slice %2 {offsets = [2, 0, 0], sizes = [1, 8, 8], strides = [1, 1, 1]} : vector<11x8x8xf32> to vector<1x8x8xf32>
    %40 = vector.shape_cast %39 : vector<1x8x8xf32> to vector<8x8xf32>
    %41 = vector.extract_strided_slice %40 {offsets = [0, 0], sizes = [1, 8], strides = [1, 1]} : vector<8x8xf32> to vector<1x8xf32>
    %42 = vector.broadcast %38 : vector<8x1xf32> to vector<8x8xf32>
    %43 = vector.broadcast %41 : vector<1x8xf32> to vector<8x8xf32>
    %44 = arith.mulf %42, %43 : vector<8x8xf32>
    %45 = vector.extract_strided_slice %3 {offsets = [2, 0], sizes = [1, 8], strides = [1, 1]} : vector<9x8xf32> to vector<1x8xf32>
    %46 = vector.broadcast %45 : vector<1x8xf32> to vector<8x8xf32>
    %47 = arith.addf %44, %46 : vector<8x8xf32>
    %cst_18 = arith.constant 0.000000e+00 : f32
    %48 = vector.broadcast %cst_18 : f32 to vector<8x8xf32>
    %49 = arith.maximumf %47, %48 : vector<8x8xf32>
    %50 = vector.extract_strided_slice %2 {offsets = [3, 0, 0], sizes = [1, 8, 8], strides = [1, 1, 1]} : vector<11x8x8xf32> to vector<1x8x8xf32>
    %51 = vector.shape_cast %50 : vector<1x8x8xf32> to vector<8x8xf32>
    %cst_19 = arith.constant dense<0.000000e+00> : vector<8x8xf32>
    %52 = tpu.matmul %49, %51, %cst_19 {dimension_numbers = #tpu.dot_dimension_numbers<[1], [0], [0], [1], [0, 0, 1, 1], [], []>} : vector<8x8xf32>, vector<8x8xf32>, vector<8x8xf32> -> vector<8x8xf32>
    %53 = vector.extract_strided_slice %3 {offsets = [3, 0], sizes = [1, 8], strides = [1, 1]} : vector<9x8xf32> to vector<1x8xf32>
    %54 = vector.broadcast %53 : vector<1x8xf32> to vector<8x8xf32>
    %55 = arith.addf %52, %54 : vector<8x8xf32>
    %cst_20 = arith.constant 0.000000e+00 : f32
    %56 = vector.broadcast %cst_20 : f32 to vector<8x8xf32>
    %57 = arith.maximumf %55, %56 : vector<8x8xf32>
    %c0_21 = arith.constant 0 : index
    %c0_22 = arith.constant 0 : index
    %58 = vector.load %arg2[%c0_21, %c0_22] : memref<8x1xi32, #tpu.memory_space<vmem>>, vector<8x1xi32>
    %59 = tpu.iota {dimensions = array<i32: 1>} : vector<8x16xi32>
    %60 = vector.broadcast %58 : vector<8x1xi32> to vector<8x16xi32>
    %61 = arith.cmpi eq, %59, %60 : vector<8x16xi32>
    %62 = arith.extui %61 : vector<8x16xi1> to vector<8x16xi32>
    %63 = arith.sitofp %62 : vector<8x16xi32> to vector<8x16xf32>
    %c0_23 = arith.constant 0 : index
    %c0_24 = arith.constant 0 : index
    %64 = vector.load %arg3[%c0_23, %c0_24] : memref<16x8xf32, #tpu.memory_space<vmem>>, vector<16x8xf32>
    %cst_25 = arith.constant dense<0.000000e+00> : vector<8x8xf32>
    %65 = tpu.matmul %63, %64, %cst_25 {dimension_numbers = #tpu.dot_dimension_numbers<[1], [0], [0], [1], [0, 0, 1, 1], [], []>} : vector<8x16xf32>, vector<16x8xf32>, vector<8x8xf32> -> vector<8x8xf32>
    %cst_26 = arith.constant 0.000000e+00 : f32
    %66 = vector.broadcast %cst_26 : f32 to vector<8x8xf32>
    %67 = arith.maximumf %65, %66 : vector<8x8xf32>
    %68 = vector.extract_strided_slice %2 {offsets = [4, 0, 0], sizes = [1, 8, 8], strides = [1, 1, 1]} : vector<11x8x8xf32> to vector<1x8x8xf32>
    %69 = vector.shape_cast %68 : vector<1x8x8xf32> to vector<8x8xf32>
    %cst_27 = arith.constant dense<0.000000e+00> : vector<8x8xf32>
    %70 = tpu.matmul %67, %69, %cst_27 {dimension_numbers = #tpu.dot_dimension_numbers<[1], [0], [0], [1], [0, 0, 1, 1], [], []>} : vector<8x8xf32>, vector<8x8xf32>, vector<8x8xf32> -> vector<8x8xf32>
    %71 = vector.extract_strided_slice %3 {offsets = [4, 0], sizes = [1, 8], strides = [1, 1]} : vector<9x8xf32> to vector<1x8xf32>
    %72 = vector.broadcast %71 : vector<1x8xf32> to vector<8x8xf32>
    %73 = arith.addf %70, %72 : vector<8x8xf32>
    %cst_28 = arith.constant 0.000000e+00 : f32
    %74 = vector.broadcast %cst_28 : f32 to vector<8x8xf32>
    %75 = arith.maximumf %73, %74 : vector<8x8xf32>
    %76 = vector.extract_strided_slice %2 {offsets = [5, 0, 0], sizes = [1, 8, 8], strides = [1, 1, 1]} : vector<11x8x8xf32> to vector<1x8x8xf32>
    %77 = vector.shape_cast %76 : vector<1x8x8xf32> to vector<8x8xf32>
    %cst_29 = arith.constant dense<0.000000e+00> : vector<8x8xf32>
    %78 = tpu.matmul %57, %77, %cst_29 {dimension_numbers = #tpu.dot_dimension_numbers<[1], [0], [0], [1], [0, 0, 1, 1], [], []>} : vector<8x8xf32>, vector<8x8xf32>, vector<8x8xf32> -> vector<8x8xf32>
    %79 = vector.extract_strided_slice %2 {offsets = [6, 0, 0], sizes = [1, 8, 8], strides = [1, 1, 1]} : vector<11x8x8xf32> to vector<1x8x8xf32>
    %80 = vector.shape_cast %79 : vector<1x8x8xf32> to vector<8x8xf32>
    %cst_30 = arith.constant dense<0.000000e+00> : vector<8x8xf32>
    %81 = tpu.matmul %75, %80, %cst_30 {dimension_numbers = #tpu.dot_dimension_numbers<[1], [0], [0], [1], [0, 0, 1, 1], [], []>} : vector<8x8xf32>, vector<8x8xf32>, vector<8x8xf32> -> vector<8x8xf32>
    %82 = arith.addf %78, %81 : vector<8x8xf32>
    %83 = vector.extract_strided_slice %2 {offsets = [7, 0, 0], sizes = [1, 8, 8], strides = [1, 1, 1]} : vector<11x8x8xf32> to vector<1x8x8xf32>
    %84 = vector.shape_cast %83 : vector<1x8x8xf32> to vector<8x8xf32>
    %cst_31 = arith.constant dense<0.000000e+00> : vector<8x8xf32>
    %85 = tpu.matmul %37, %84, %cst_31 {dimension_numbers = #tpu.dot_dimension_numbers<[1], [0], [0], [1], [0, 0, 1, 1], [], []>} : vector<8x8xf32>, vector<8x8xf32>, vector<8x8xf32> -> vector<8x8xf32>
    %86 = arith.addf %82, %85 : vector<8x8xf32>
    %87 = vector.extract_strided_slice %3 {offsets = [5, 0], sizes = [1, 8], strides = [1, 1]} : vector<9x8xf32> to vector<1x8xf32>
    %88 = vector.broadcast %87 : vector<1x8xf32> to vector<8x8xf32>
    %89 = arith.addf %86, %88 : vector<8x8xf32>
    %cst_32 = arith.constant 0.000000e+00 : f32
    %90 = vector.broadcast %cst_32 : f32 to vector<8x8xf32>
    %91 = arith.maximumf %89, %90 : vector<8x8xf32>
    %92 = vector.extract_strided_slice %2 {offsets = [8, 0, 0], sizes = [1, 8, 8], strides = [1, 1, 1]} : vector<11x8x8xf32> to vector<1x8x8xf32>
    %93 = vector.shape_cast %92 : vector<1x8x8xf32> to vector<8x8xf32>
    %cst_33 = arith.constant dense<0.000000e+00> : vector<8x8xf32>
    %94 = tpu.matmul %91, %93, %cst_33 {dimension_numbers = #tpu.dot_dimension_numbers<[1], [0], [0], [1], [0, 0, 1, 1], [], []>} : vector<8x8xf32>, vector<8x8xf32>, vector<8x8xf32> -> vector<8x8xf32>
    %95 = vector.extract_strided_slice %3 {offsets = [6, 0], sizes = [1, 8], strides = [1, 1]} : vector<9x8xf32> to vector<1x8xf32>
    %96 = vector.broadcast %95 : vector<1x8xf32> to vector<8x8xf32>
    %97 = arith.addf %94, %96 : vector<8x8xf32>
    %cst_34 = arith.constant 0.000000e+00 : f32
    %98 = vector.broadcast %cst_34 : f32 to vector<8x8xf32>
    %99 = arith.maximumf %97, %98 : vector<8x8xf32>
    %100 = vector.extract_strided_slice %2 {offsets = [9, 0, 0], sizes = [1, 8, 8], strides = [1, 1, 1]} : vector<11x8x8xf32> to vector<1x8x8xf32>
    %101 = vector.shape_cast %100 : vector<1x8x8xf32> to vector<8x8xf32>
    %cst_35 = arith.constant dense<0.000000e+00> : vector<8x8xf32>
    %102 = tpu.matmul %99, %101, %cst_35 {dimension_numbers = #tpu.dot_dimension_numbers<[1], [0], [0], [1], [0, 0, 1, 1], [], []>} : vector<8x8xf32>, vector<8x8xf32>, vector<8x8xf32> -> vector<8x8xf32>
    %103 = vector.extract_strided_slice %3 {offsets = [7, 0], sizes = [1, 8], strides = [1, 1]} : vector<9x8xf32> to vector<1x8xf32>
    %104 = vector.broadcast %103 : vector<1x8xf32> to vector<8x8xf32>
    %105 = arith.addf %102, %104 : vector<8x8xf32>
    %cst_36 = arith.constant 0.000000e+00 : f32
    %106 = vector.broadcast %cst_36 : f32 to vector<8x8xf32>
    %107 = arith.maximumf %105, %106 : vector<8x8xf32>
    %108 = vector.extract_strided_slice %2 {offsets = [10, 0, 0], sizes = [1, 8, 8], strides = [1, 1, 1]} : vector<11x8x8xf32> to vector<1x8x8xf32>
    %109 = vector.shape_cast %108 : vector<1x8x8xf32> to vector<8x8xf32>
    %cst_37 = arith.constant dense<0.000000e+00> : vector<8x8xf32>
    %110 = tpu.matmul %107, %109, %cst_37 {dimension_numbers = #tpu.dot_dimension_numbers<[1], [0], [0], [1], [0, 0, 1, 1], [], []>} : vector<8x8xf32>, vector<8x8xf32>, vector<8x8xf32> -> vector<8x8xf32>
    %111 = vector.extract_strided_slice %3 {offsets = [8, 0], sizes = [1, 8], strides = [1, 1]} : vector<9x8xf32> to vector<1x8xf32>
    %112 = vector.broadcast %111 : vector<1x8xf32> to vector<8x8xf32>
    %113 = arith.addf %110, %112 : vector<8x8xf32>
    %cst_38 = arith.constant 0.000000e+00 : f32
    %114 = vector.broadcast %cst_38 : f32 to vector<8x8xf32>
    %115 = arith.subf %114, %113 : vector<8x8xf32>
    %116 = math.exp %115 : vector<8x8xf32>
    %cst_39 = arith.constant 1.000000e+00 : f32
    %117 = vector.broadcast %cst_39 : f32 to vector<8x8xf32>
    %118 = arith.addf %117, %116 : vector<8x8xf32>
    %cst_40 = arith.constant 1.000000e+00 : f32
    %119 = vector.broadcast %cst_40 : f32 to vector<8x8xf32>
    %120 = arith.divf %119, %118 : vector<8x8xf32>
    %121 = vector.extract_strided_slice %120 {offsets = [0, 0], sizes = [8, 1], strides = [1, 1]} : vector<8x8xf32> to vector<8x1xf32>
    %c0_41 = arith.constant 0 : index
    %c0_42 = arith.constant 0 : index
    %122 = vector.load %arg6[%c0_41, %c0_42] : memref<8x1xf32, #tpu.memory_space<vmem>>, vector<8x1xf32>
    tpu.vector_store %arg6[%c0_41, %c0_42], %121 {strides = array<i32>} : memref<8x1xf32, #tpu.memory_space<vmem>>, vector<8x1xf32>,
    %c0_43 = arith.constant 0 : index
    %c0_44 = arith.constant 0 : index
    %123 = vector.load %arg7[%c0_43, %c0_44] : memref<8x1xf32, #tpu.memory_space<vmem>>, vector<8x1xf32>
    tpu.vector_store %arg7[%c0_43, %c0_44], %26 {strides = array<i32>} : memref<8x1xf32, #tpu.memory_space<vmem>>, vector<8x1xf32>,
    return
  }
}

</mosaic_0001>

<llo_original>
// kernel: tpu_custom_call.1
$region0: #{tpu_custom_call.1}
  #allocation0 [shape = 'u32[]', space=smem, size = 0x4, offset = 0x4, fixed_abs, tag = 'smem constant byte address 0x4 - core index']
  #allocation1 [shape = 'u32[144,128]{1,0:T(1,128)}', space=vmem, size = 0x12000, scoped, tag = 'internal scratch']
  %s0 = inlined_call_operand.vmem [shape: f32[8,8], index: 0, kind: input, shape index: {}]
  %s1 = inlined_call_operand.vmem [shape: f32[8,2], index: 1, kind: input, shape index: {}]
  %s2 = inlined_call_operand.vmem [shape: s32[8,1], index: 2, kind: input, shape index: {}]
  %s3 = inlined_call_operand.vmem [shape: f32[16,8], index: 3, kind: input, shape index: {}]
  %s4 = inlined_call_operand.vmem [shape: f32[11,8,8], index: 4, kind: input, shape index: {}]
  %s5 = inlined_call_operand.vmem [shape: f32[9,8], index: 5, kind: input, shape index: {}]
  %s6 = inlined_call_operand.vmem [shape: f32[8,1], index: 6, kind: output, shape index: {0}]
  %s7 = inlined_call_operand.vmem [shape: f32[8,1], index: 7, kind: output, shape index: {1}]
  %8 = xla_tuple %s6, %s7
  %s9 = sld [smem:[#allocation0]]
  $region42: #{tpu_custom_call.1} parent=0
    _
  %s11 = ssub.s32 1, %s9
  %s12 = scalar_select 0, %s11, %s9
  // Predicated region
  $region2: #{tpu_custom_call.1} parent=0 // pred_check
    _
  $region3: #{tpu_custom_call.1} parent=0 // pred_check_branch
    %14 = sbr.rel (0) target = $region5
  $region4: #{tpu_custom_call.1} parent=0 // pred_region
    _
  $region5: #{tpu_custom_call.1} parent=0 // pred_fallthru
    _
  // Predicated region
  $region6: #{tpu_custom_call.1} parent=0 // pred_check
    _
  $region7: #{tpu_custom_call.1} parent=0 // pred_check_branch
    %16 = sbr.rel (0) target = $region9
  $region8: #{tpu_custom_call.1} parent=0 // pred_region
    _
  $region9: #{tpu_custom_call.1} parent=0 // pred_fallthru
    _
  // Predicated region
  $region10: #{tpu_custom_call.1} parent=0 // pred_check
    _
  $region11: #{tpu_custom_call.1} parent=0 // pred_check_branch
    %18 = sbr.rel (0) target = $region13
  $region12: #{tpu_custom_call.1} parent=0 // pred_region
    _
  $region13: #{tpu_custom_call.1} parent=0 // pred_fallthru
    _
  // Predicated region
  $region14: #{tpu_custom_call.1} parent=0 // pred_check
    _
  $region15: #{tpu_custom_call.1} parent=0 // pred_check_branch
    %20 = sbr.rel (0) target = $region17
  $region16: #{tpu_custom_call.1} parent=0 // pred_region
    _
  $region17: #{tpu_custom_call.1} parent=0 // pred_fallthru
    _
  // Predicated region
  $region18: #{tpu_custom_call.1} parent=0 // pred_check
    _
  $region19: #{tpu_custom_call.1} parent=0 // pred_check_branch
    %22 = sbr.rel (0) target = $region21
  $region20: #{tpu_custom_call.1} parent=0 // pred_region
    _
  $region21: #{tpu_custom_call.1} parent=0 // pred_fallthru
    _
  // Predicated region
  $region22: #{tpu_custom_call.1} parent=0 // pred_check
    _
  $region23: #{tpu_custom_call.1} parent=0 // pred_check_branch
    %24 = sbr.rel (0) target = $region25
  $region24: #{tpu_custom_call.1} parent=0 // pred_region
    _
  $region25: #{tpu_custom_call.1} parent=0 // pred_fallthru
    _
  %v25 = vld [vmem:[%s0] sm:$0xff]
  %v26 = vld [vmem:[%s1] sm:$0xff]
  %v27 = vld [vmem:[%s4] sm:$0xff]
  %v28 = vld [vmem:[%s4 + $0x8] sm:$0xff]
  %v29 = vld [vmem:[%s4 + $0x10] sm:$0xff]
  %v30 = vld [vmem:[%s4 + $0x18] sm:$0xff]
  %v31 = vld [vmem:[%s4 + $0x20] sm:$0xff]
  %v32 = vld [vmem:[%s4 + $0x28] sm:$0xff]
  %v33 = vld [vmem:[%s4 + $0x30] sm:$0xff]
  %v34 = vld [vmem:[%s4 + $0x38] sm:$0xff]
  %v35 = vld [vmem:[%s4 + $0x40] sm:$0xff]
  %v36 = vld [vmem:[%s4 + $0x48] sm:$0xff]
  %v37 = vld [vmem:[%s4 + $0x50] sm:$0xff]
  %v38 = vld [vmem:[%s5] sm:$0xff]
  %v39 = vld [vmem:[%s5 + $0x8] sm:$0x1]
  %41 = vset.pattern.permute.xlu0 1
  %42 = vperm.xlu0 %41, %v26
  %v43 = vpop.permute.xlu0 %42
  %v45 = vlaneseq
  %v46 = vshrl.u32 %v45, 7
  %v47 = vsub.s32 0, %v46
  %v48 = vrot.slane %v27, %v47
  %v49 = vmul.f32 %v43, %v48
  %v50 = vlaneseq
  %v51 = vshrl.u32 %v50, 7
  %v52 = vsub.s32 0, %v51
  %v53 = vrot.slane %v38, %v52
  %vm54 = vcmask 64512
  %v56 = vsel %vm54, %v25, 0
  %58 = vmatprep.subr.mxu0 0.0
  %59 = vmatpush1.msra.mxu0 %v49
  %60 = vmatprep.subr.mxu0 0.0
  %61 = vmatpush1.msra.mxu0 0.0
  %62 = vmatprep.subr.mxu0 0.0
  %63 = vmatpush1.msra.mxu0 0.0
  %64 = vmatprep.subr.mxu0 0.0
  %65 = vmatpush1.msra.mxu0 0.0
  %66 = vmatprep.subr.mxu0 0.0
  %67 = vmatpush1.msra.mxu0 0.0
  %68 = vmatprep.subr.mxu0 0.0
  %69 = vmatpush1.msra.mxu0 0.0
  %70 = vmatprep.subr.mxu0 0.0
  %71 = vmatpush1.msra.mxu0 0.0
  %72 = vmatprep.subr.mxu0 0.0
  %73 = vmatpush1.msra.mxu0 0.0
  %74 = vmatprep.subr.mxu0 0.0
  %75 = vmatpush1.msra.mxu0 0.0
  %76 = vmatprep.subr.mxu0 0.0
  %77 = vmatpush1.msra.mxu0 0.0
  %78 = vmatprep.subr.mxu0 0.0
  %79 = vmatpush1.msra.mxu0 0.0
  %80 = vmatprep.subr.mxu0 0.0
  %81 = vmatpush1.msra.mxu0 0.0
  %82 = vmatprep.subr.mxu0 0.0
  %83 = vmatpush1.msra.mxu0 0.0
  %84 = vmatprep.subr.mxu0 0.0
  %85 = vmatpush1.msra.mxu0 0.0
  %86 = vmatprep.subr.mxu0 0.0
  %87 = vmatpush1.msra.mxu0 0.0
  %88 = vmatprep.subr.mxu0 0.0
  %89 = vmatpush1.msra.mxu0 0.0
  %90 = vmatprep.subr.mxu0 0.0
  %91 = vmatpush1.msra.mxu0 0.0
  %92 = vmatprep.subr.mxu0 0.0
  %93 = vmatpush1.msra.mxu0 0.0
  %94 = vmatprep.subr.mxu0 0.0
  %95 = vmatpush1.msra.mxu0 0.0
  %96 = vmatprep.subr.mxu0 0.0
  %97 = vmatpush1.msra.mxu0 0.0
  %98 = vmatprep.subr.mxu0 0.0
  %99 = vmatpush1.msra.mxu0 0.0
  %100 = vmatprep.subr.mxu0 0.0
  %101 = vmatpush1.msra.mxu0 0.0
  %102 = vmatprep.subr.mxu0 0.0
  %103 = vmatpush1.msra.mxu0 0.0
  %104 = vmatprep.subr.mxu0 0.0
  %105 = vmatpush1.msra.mxu0 0.0
  %106 = vmatprep.subr.mxu0 0.0
  %107 = vmatpush1.msra.mxu0 0.0
  %108 = vmatprep.subr.mxu0 0.0
  %109 = vmatpush1.msra.mxu0 0.0
  %110 = vmatprep.subr.mxu0 0.0
  %111 = vmatpush1.msra.mxu0 0.0
  %112 = vmatprep.subr.mxu0 0.0
  %113 = vmatpush1.msra.mxu0 0.0
  %114 = vmatprep.subr.mxu0 0.0
  %115 = vmatpush1.msra.mxu0 0.0
  %116 = vmatprep.subr.mxu0 0.0
  %117 = vmatpush1.msra.mxu0 0.0
  %118 = vmatprep.subr.mxu0 0.0
  %119 = vmatpush1.msra.mxu0 0.0
  %120 = vmatprep.subr.mxu0 0.0
  %121 = vmatpush1.msra.mxu0 0.0
  %122 = vmatprep.mubr.f32.mxu0 0.0
  %123 = vmatmul.mubr.f32.gmra.mrb[0].mxu0 %v56
  %v124 = vpop.f32.mrb[0].mxu0
  %v125 = vadd.f32 %v53, %v124
  %v126 = vpop.f32.mrb[0].mxu0
  %127 = vdwg.mxu0
  %v128 = vmax.f32 %v125, 0.0
  %v130 = vsel %vm54, %v128, 0
  %132 = vmatprep.subr.mxu0 0.0
  %133 = vmatpush1.msra.mxu0 %v28
  %134 = vmatprep.subr.mxu0 0.0
  %135 = vmatpush1.msra.mxu0 0.0
  %136 = vmatprep.subr.mxu0 0.0
  %137 = vmatpush1.msra.mxu0 0.0
  %138 = vmatprep.subr.mxu0 0.0
  %139 = vmatpush1.msra.mxu0 0.0
  %140 = vmatprep.subr.mxu0 0.0
  %141 = vmatpush1.msra.mxu0 0.0
  %142 = vmatprep.subr.mxu0 0.0
  %143 = vmatpush1.msra.mxu0 0.0
  %144 = vmatprep.subr.mxu0 0.0
  %145 = vmatpush1.msra.mxu0 0.0
  %146 = vmatprep.subr.mxu0 0.0
  %147 = vmatpush1.msra.mxu0 0.0
  %148 = vmatprep.subr.mxu0 0.0
  %149 = vmatpush1.msra.mxu0 0.0
  %150 = vmatprep.subr.mxu0 0.0
  %151 = vmatpush1.msra.mxu0 0.0
  %152 = vmatprep.subr.mxu0 0.0
  %153 = vmatpush1.msra.mxu0 0.0
  %154 = vmatprep.subr.mxu0 0.0
  %155 = vmatpush1.msra.mxu0 0.0
  %156 = vmatprep.subr.mxu0 0.0
  %157 = vmatpush1.msra.mxu0 0.0
  %158 = vmatprep.subr.mxu0 0.0
  %159 = vmatpush1.msra.mxu0 0.0
  %160 = vmatprep.subr.mxu0 0.0
  %161 = vmatpush1.msra.mxu0 0.0
  %162 = vmatprep.subr.mxu0 0.0
  %163 = vmatpush1.msra.mxu0 0.0
  %164 = vmatprep.subr.mxu0 0.0
  %165 = vmatpush1.msra.mxu0 0.0
  %166 = vmatprep.subr.mxu0 0.0
  %167 = vmatpush1.msra.mxu0 0.0
  %168 = vmatprep.subr.mxu0 0.0
  %169 = vmatpush1.msra.mxu0 0.0
  %170 = vmatprep.subr.mxu0 0.0
  %171 = vmatpush1.msra.mxu0 0.0
  %172 = vmatprep.subr.mxu0 0.0
  %173 = vmatpush1.msra.mxu0 0.0
  %174 = vmatprep.subr.mxu0 0.0
  %175 = vmatpush1.msra.mxu0 0.0
  %176 = vmatprep.subr.mxu0 0.0
  %177 = vmatpush1.msra.mxu0 0.0
  %178 = vmatprep.subr.mxu0 0.0
  %179 = vmatpush1.msra.mxu0 0.0
  %180 = vmatprep.subr.mxu0 0.0
  %181 = vmatpush1.msra.mxu0 0.0
  %182 = vmatprep.subr.mxu0 0.0
  %183 = vmatpush1.msra.mxu0 0.0
  %184 = vmatprep.subr.mxu0 0.0
  %185 = vmatpush1.msra.mxu0 0.0
  %186 = vmatprep.subr.mxu0 0.0
  %187 = vmatpush1.msra.mxu0 0.0
  %188 = vmatprep.subr.mxu0 0.0
  %189 = vmatpush1.msra.mxu0 0.0
  %190 = vmatprep.subr.mxu0 0.0
  %191 = vmatpush1.msra.mxu0 0.0
  %192 = vmatprep.subr.mxu0 0.0
  %193 = vmatpush1.msra.mxu0 0.0
  %194 = vmatprep.subr.mxu0 0.0
  %195 = vmatpush1.msra.mxu0 0.0
  %196 = vmatprep.mubr.f32.mxu0 0.0
  %197 = vmatmul.mubr.f32.gmra.mrb[0].mxu0 %v130
  %v198 = vpop.f32.mrb[0].mxu0
  %v199 = vadd.f32 0.0, %v198
  %v200 = vpop.f32.mrb[0].mxu0
  %201 = vdwg.mxu0
  %v202 = vlaneseq
  %v203 = vshrl.u32 %v202, 7
  %v204 = vsub.s32 1, %v203
  %v205 = vrot.slane %v38, %v204
  %206 = vmatprep.subr.mxu0 0.0
  %207 = vmatpush1.msra.mxu0 %v199
  %208 = vmatprep.subr.mxu0 0.0
  %209 = vmatpush1.msra.mxu0 0.0
  %210 = vmatprep.subr.mxu0 0.0
  %211 = vmatpush1.msra.mxu0 0.0
  %212 = vmatprep.subr.mxu0 0.0
  %213 = vmatpush1.msra.mxu0 0.0
  %214 = vmatprep.subr.mxu0 0.0
  %215 = vmatpush1.msra.mxu0 0.0
  %216 = vmatprep.subr.mxu0 0.0
  %217 = vmatpush1.msra.mxu0 0.0
  %218 = vmatprep.subr.mxu0 0.0
  %219 = vmatpush1.msra.mxu0 0.0
  %220 = vmatprep.subr.mxu0 0.0
  %221 = vmatpush1.msra.mxu0 0.0
  %222 = vmatprep.subr.mxu0 0.0
  %223 = vmatpush1.msra.mxu0 0.0
  %224 = vmatprep.subr.mxu0 0.0
  %225 = vmatpush1.msra.mxu0 0.0
  %226 = vmatprep.subr.mxu0 0.0
  %227 = vmatpush1.msra.mxu0 0.0
  %228 = vmatprep.subr.mxu0 0.0
  %229 = vmatpush1.msra.mxu0 0.0
  %230 = vmatprep.subr.mxu0 0.0
  %231 = vmatpush1.msra.mxu0 0.0
  %232 = vmatprep.subr.mxu0 0.0
  %233 = vmatpush1.msra.mxu0 0.0
  %234 = vmatprep.subr.mxu0 0.0
  %235 = vmatpush1.msra.mxu0 0.0
  %236 = vmatprep.subr.mxu0 0.0
  %237 = vmatpush1.msra.mxu0 0.0
  %238 = vmatprep.subr.mxu0 0.0
  %239 = vmatpush1.msra.mxu0 0.0
  %240 = vmatprep.subr.mxu0 0.0
  %241 = vmatpush1.msra.mxu0 0.0
  %242 = vmatprep.subr.mxu0 0.0
  %243 = vmatpush1.msra.mxu0 0.0
  %244 = vmatprep.subr.mxu0 0.0
  %245 = vmatpush1.msra.mxu0 0.0
  %246 = vmatprep.subr.mxu0 0.0
  %247 = vmatpush1.msra.mxu0 0.0
  %248 = vmatprep.subr.mxu0 0.0
  %249 = vmatpush1.msra.mxu0 0.0
  %250 = vmatprep.subr.mxu0 0.0
  %251 = vmatpush1.msra.mxu0 0.0
  %252 = vmatprep.subr.mxu0 0.0
  %253 = vmatpush1.msra.mxu0 0.0
  %254 = vmatprep.subr.mxu0 0.0
  %255 = vmatpush1.msra.mxu0 0.0
  %256 = vmatprep.subr.mxu0 0.0
  %257 = vmatpush1.msra.mxu0 0.0
  %258 = vmatprep.subr.mxu0 0.0
  %259 = vmatpush1.msra.mxu0 0.0
  %260 = vmatprep.subr.mxu0 0.0
  %261 = vmatpush1.msra.mxu0 0.0
  %262 = vmatprep.subr.mxu0 0.0
  %263 = vmatpush1.msra.mxu0 0.0
  %264 = vmatprep.subr.mxu0 0.0
  %265 = vmatpush1.msra.mxu0 0.0
  %266 = vmatprep.subr.mxu0 0.0
  %267 = vmatpush1.msra.mxu0 0.0
  %268 = vmatprep.subr.mxu0 0.0
  %269 = vmatpush1.msra.mxu0 0.0
  %270 = vmatprep.mubr.f32.mxu0 0.0
  %271 = vmatmul.mubr.f32.gmra.mrb[0].mxu0 %v56
  %v272 = vpop.f32.mrb[0].mxu0
  %v273 = vadd.f32 %v205, %v272
  %v274 = vpop.f32.mrb[0].mxu0
  %275 = vdwg.mxu0
  %v276 = vmax.f32 %v273, 0.0
  %v277 = vsel %vm54, %v276, 0.0
  %278 = vadd.xlane.f32.xlu0 %v277
  %v279 = vpop.xlane.xlu0 %278
  %v280 = vmul.f32 %v279, 0.2
  %v281 = vrot.slane %v280, 4
  %v282 = vadd.f32 %v280, %v281
  %v283 = vrot.slane %v282, 2
  %v284 = vadd.f32 %v282, %v283
  %v285 = vrot.slane %v284, 1
  %v286 = vadd.f32 %v284, %v285
  %v287 = vmul.f32 %v286, 0.125
  %v288 = vadd.f32 %v287, 0.0
  %289 = vset.pattern.permute.xlu0 0
  %290 = vperm.xlu0 %289, %v26
  %v291 = vpop.permute.xlu0 %290
  %v293 = vlaneseq
  %v294 = vshrl.u32 %v293, 7
  %v295 = vsub.s32 0, %v294
  %v296 = vrot.slane %v29, %v295
  %v297 = vmul.f32 %v291, %v296
  %v298 = vlaneseq
  %v299 = vshrl.u32 %v298, 7
  %v300 = vsub.s32 2, %v299
  %v301 = vrot.slane %v38, %v300
  %v302 = vadd.f32 %v297, %v301
  %v303 = vmax.f32 %v302, 0.0
  %v304 = vlaneseq
  %v305 = vshrl.u32 %v304, 7
  %v306 = vsub.s32 3, %v305
  %v307 = vrot.slane %v38, %v306
  %v309 = vsel %vm54, %v303, 0
  %311 = vmatprep.subr.mxu0 0.0
  %312 = vmatpush1.msra.mxu0 %v30
  %313 = vmatprep.subr.mxu0 0.0
  %314 = vmatpush1.msra.mxu0 0.0
  %315 = vmatprep.subr.mxu0 0.0
  %316 = vmatpush1.msra.mxu0 0.0
  %317 = vmatprep.subr.mxu0 0.0
  %318 = vmatpush1.msra.mxu0 0.0
  %319 = vmatprep.subr.mxu0 0.0
  %320 = vmatpush1.msra.mxu0 0.0
  %321 = vmatprep.subr.mxu0 0.0
  %322 = vmatpush1.msra.mxu0 0.0
  %323 = vmatprep.subr.mxu0 0.0
  %324 = vmatpush1.msra.mxu0 0.0
  %325 = vmatprep.subr.mxu0 0.0
  %326 = vmatpush1.msra.mxu0 0.0
  %327 = vmatprep.subr.mxu0 0.0
  %328 = vmatpush1.msra.mxu0 0.0
  %329 = vmatprep.subr.mxu0 0.0
  %330 = vmatpush1.msra.mxu0 0.0
  %331 = vmatprep.subr.mxu0 0.0
  %332 = vmatpush1.msra.mxu0 0.0
  %333 = vmatprep.subr.mxu0 0.0
  %334 = vmatpush1.msra.mxu0 0.0
  %335 = vmatprep.subr.mxu0 0.0
  %336 = vmatpush1.msra.mxu0 0.0
  %337 = vmatprep.subr.mxu0 0.0
  %338 = vmatpush1.msra.mxu0 0.0
  %339 = vmatprep.subr.mxu0 0.0
  %340 = vmatpush1.msra.mxu0 0.0
  %341 = vmatprep.subr.mxu0 0.0
  %342 = vmatpush1.msra.mxu0 0.0
  %343 = vmatprep.subr.mxu0 0.0
  %344 = vmatpush1.msra.mxu0 0.0
  %345 = vmatprep.subr.mxu0 0.0
  %346 = vmatpush1.msra.mxu0 0.0
  %347 = vmatprep.subr.mxu0 0.0
  %348 = vmatpush1.msra.mxu0 0.0
  %349 = vmatprep.subr.mxu0 0.0
  %350 = vmatpush1.msra.mxu0 0.0
  %351 = vmatprep.subr.mxu0 0.0
  %352 = vmatpush1.msra.mxu0 0.0
  %353 = vmatprep.subr.mxu0 0.0
  %354 = vmatpush1.msra.mxu0 0.0
  %355 = vmatprep.subr.mxu0 0.0
  %356 = vmatpush1.msra.mxu0 0.0
  %357 = vmatprep.subr.mxu0 0.0
  %358 = vmatpush1.msra.mxu0 0.0
  %359 = vmatprep.subr.mxu0 0.0
  %360 = vmatpush1.msra.mxu0 0.0
  %361 = vmatprep.subr.mxu0 0.0
  %362 = vmatpush1.msra.mxu0 0.0
  %363 = vmatprep.subr.mxu0 0.0
  %364 = vmatpush1.msra.mxu0 0.0
  %365 = vmatprep.subr.mxu0 0.0
  %366 = vmatpush1.msra.mxu0 0.0
  %367 = vmatprep.subr.mxu0 0.0
  %368 = vmatpush1.msra.mxu0 0.0
  %369 = vmatprep.subr.mxu0 0.0
  %370 = vmatpush1.msra.mxu0 0.0
  %371 = vmatprep.subr.mxu0 0.0
  %372 = vmatpush1.msra.mxu0 0.0
  %373 = vmatprep.subr.mxu0 0.0
  %374 = vmatpush1.msra.mxu0 0.0
  %375 = vmatprep.mubr.f32.mxu0 0.0
  %376 = vmatmul.mubr.f32.gmra.mrb[0].mxu0 %v309
  %v377 = vpop.f32.mrb[0].mxu0
  %v378 = vadd.f32 %v307, %v377
  %v379 = vpop.f32.mrb[0].mxu0
  %380 = vdwg.mxu0
  %v381 = vmax.f32 %v378, 0.0
  %v382 = vld [vmem:[%s2] sm:$0xff]
  %v383 = vlaneseq
  %v384 = vand.u32 %v383, 127
  %385 = vset.pattern.permute.xlu0 0
  %386 = vperm.xlu0 %385, %v382
  %v387 = vpop.permute.xlu0 %386
  %vm388 = vcmp.eq.s32.totalorder %v384, %v387
  %v389 = vsel %vm388, 1, 0
  %v390 = vcvt.s32.f32 %v389
  %v391 = vld [vmem:[%s3] sm:$0xff]
  %v392 = vld [vmem:[%s3 + $0x8] sm:$0xff]
  %vm393 = vcmask 130048
  %v395 = vsel %vm393, %v390, 0
  %397 = vmatprep.subr.mxu0 0.0
  %398 = vmatpush1.msra.mxu0 %v391
  %399 = vmatprep.subr.mxu0 0.0
  %400 = vmatpush1.msra.mxu0 %v392
  %401 = vmatprep.subr.mxu0 0.0
  %402 = vmatpush1.msra.mxu0 0.0
  %403 = vmatprep.subr.mxu0 0.0
  %404 = vmatpush1.msra.mxu0 0.0
  %405 = vmatprep.subr.mxu0 0.0
  %406 = vmatpush1.msra.mxu0 0.0
  %407 = vmatprep.subr.mxu0 0.0
  %408 = vmatpush1.msra.mxu0 0.0
  %409 = vmatprep.subr.mxu0 0.0
  %410 = vmatpush1.msra.mxu0 0.0
  %411 = vmatprep.subr.mxu0 0.0
  %412 = vmatpush1.msra.mxu0 0.0
  %413 = vmatprep.subr.mxu0 0.0
  %414 = vmatpush1.msra.mxu0 0.0
  %415 = vmatprep.subr.mxu0 0.0
  %416 = vmatpush1.msra.mxu0 0.0
  %417 = vmatprep.subr.mxu0 0.0
  %418 = vmatpush1.msra.mxu0 0.0
  %419 = vmatprep.subr.mxu0 0.0
  %420 = vmatpush1.msra.mxu0 0.0
  %421 = vmatprep.subr.mxu0 0.0
  %422 = vmatpush1.msra.mxu0 0.0
  %423 = vmatprep.subr.mxu0 0.0
  %424 = vmatpush1.msra.mxu0 0.0
  %425 = vmatprep.subr.mxu0 0.0
  %426 = vmatpush1.msra.mxu0 0.0
  %427 = vmatprep.subr.mxu0 0.0
  %428 = vmatpush1.msra.mxu0 0.0
  %429 = vmatprep.subr.mxu0 0.0
  %430 = vmatpush1.msra.mxu0 0.0
  %431 = vmatprep.subr.mxu0 0.0
  %432 = vmatpush1.msra.mxu0 0.0
  %433 = vmatprep.subr.mxu0 0.0
  %434 = vmatpush1.msra.mxu0 0.0
  %435 = vmatprep.subr.mxu0 0.0
  %436 = vmatpush1.msra.mxu0 0.0
  %437 = vmatprep.subr.mxu0 0.0
  %438 = vmatpush1.msra.mxu0 0.0
  %439 = vmatprep.subr.mxu0 0.0
  %440 = vmatpush1.msra.mxu0 0.0
  %441 = vmatprep.subr.mxu0 0.0
  %442 = vmatpush1.msra.mxu0 0.0
  %443 = vmatprep.subr.mxu0 0.0
  %444 = vmatpush1.msra.mxu0 0.0
  %445 = vmatprep.subr.mxu0 0.0
  %446 = vmatpush1.msra.mxu0 0.0
  %447 = vmatprep.subr.mxu0 0.0
  %448 = vmatpush1.msra.mxu0 0.0
  %449 = vmatprep.subr.mxu0 0.0
  %450 = vmatpush1.msra.mxu0 0.0
  %451 = vmatprep.subr.mxu0 0.0
  %452 = vmatpush1.msra.mxu0 0.0
  %453 = vmatprep.subr.mxu0 0.0
  %454 = vmatpush1.msra.mxu0 0.0
  %455 = vmatprep.subr.mxu0 0.0
  %456 = vmatpush1.msra.mxu0 0.0
  %457 = vmatprep.subr.mxu0 0.0
  %458 = vmatpush1.msra.mxu0 0.0
  %459 = vmatprep.subr.mxu0 0.0
  %460 = vmatpush1.msra.mxu0 0.0
  %461 = vmatprep.mubr.f32.mxu0 0.0
  %462 = vmatmul.mubr.f32.gmra.mrb[0].mxu0 %v395
  %v463 = vpop.f32.mrb[0].mxu0
  %v464 = vadd.f32 0.0, %v463
  %v465 = vpop.f32.mrb[0].mxu0
  %466 = vdwg.mxu0
  %v467 = vmax.f32 %v464, 0.0
  %v468 = vlaneseq
  %v469 = vshrl.u32 %v468, 7
  %v470 = vsub.s32 4, %v469
  %v471 = vrot.slane %v38, %v470
  %v473 = vsel %vm54, %v467, 0
  %475 = vmatprep.subr.mxu0 0.0
  %476 = vmatpush1.msra.mxu0 %v31
  %477 = vmatprep.subr.mxu0 0.0
  %478 = vmatpush1.msra.mxu0 0.0
  %479 = vmatprep.subr.mxu0 0.0
  %480 = vmatpush1.msra.mxu0 0.0
  %481 = vmatprep.subr.mxu0 0.0
  %482 = vmatpush1.msra.mxu0 0.0
  %483 = vmatprep.subr.mxu0 0.0
  %484 = vmatpush1.msra.mxu0 0.0
  %485 = vmatprep.subr.mxu0 0.0
  %486 = vmatpush1.msra.mxu0 0.0
  %487 = vmatprep.subr.mxu0 0.0
  %488 = vmatpush1.msra.mxu0 0.0
  %489 = vmatprep.subr.mxu0 0.0
  %490 = vmatpush1.msra.mxu0 0.0
  %491 = vmatprep.subr.mxu0 0.0
  %492 = vmatpush1.msra.mxu0 0.0
  %493 = vmatprep.subr.mxu0 0.0
  %494 = vmatpush1.msra.mxu0 0.0
  %495 = vmatprep.subr.mxu0 0.0
  %496 = vmatpush1.msra.mxu0 0.0
  %497 = vmatprep.subr.mxu0 0.0
  %498 = vmatpush1.msra.mxu0 0.0
  %499 = vmatprep.subr.mxu0 0.0
  %500 = vmatpush1.msra.mxu0 0.0
  %501 = vmatprep.subr.mxu0 0.0
  %502 = vmatpush1.msra.mxu0 0.0
  %503 = vmatprep.subr.mxu0 0.0
  %504 = vmatpush1.msra.mxu0 0.0
  %505 = vmatprep.subr.mxu0 0.0
  %506 = vmatpush1.msra.mxu0 0.0
  %507 = vmatprep.subr.mxu0 0.0
  %508 = vmatpush1.msra.mxu0 0.0
  %509 = vmatprep.subr.mxu0 0.0
  %510 = vmatpush1.msra.mxu0 0.0
  %511 = vmatprep.subr.mxu0 0.0
  %512 = vmatpush1.msra.mxu0 0.0
  %513 = vmatprep.subr.mxu0 0.0
  %514 = vmatpush1.msra.mxu0 0.0
  %515 = vmatprep.subr.mxu0 0.0
  %516 = vmatpush1.msra.mxu0 0.0
  %517 = vmatprep.subr.mxu0 0.0
  %518 = vmatpush1.msra.mxu0 0.0
  %519 = vmatprep.subr.mxu0 0.0
  %520 = vmatpush1.msra.mxu0 0.0
  %521 = vmatprep.subr.mxu0 0.0
  %522 = vmatpush1.msra.mxu0 0.0
  %523 = vmatprep.subr.mxu0 0.0
  %524 = vmatpush1.msra.mxu0 0.0
  %525 = vmatprep.subr.mxu0 0.0
  %526 = vmatpush1.msra.mxu0 0.0
  %527 = vmatprep.subr.mxu0 0.0
  %528 = vmatpush1.msra.mxu0 0.0
  %529 = vmatprep.subr.mxu0 0.0
  %530 = vmatpush1.msra.mxu0 0.0
  %531 = vmatprep.subr.mxu0 0.0
  %532 = vmatpush1.msra.mxu0 0.0
  %533 = vmatprep.subr.mxu0 0.0
  %534 = vmatpush1.msra.mxu0 0.0
  %535 = vmatprep.subr.mxu0 0.0
  %536 = vmatpush1.msra.mxu0 0.0
  %537 = vmatprep.subr.mxu0 0.0
  %538 = vmatpush1.msra.mxu0 0.0
  %539 = vmatprep.mubr.f32.mxu0 0.0
  %540 = vmatmul.mubr.f32.gmra.mrb[0].mxu0 %v473
  %v541 = vpop.f32.mrb[0].mxu0
  %v542 = vadd.f32 %v471, %v541
  %v543 = vpop.f32.mrb[0].mxu0
  %544 = vdwg.mxu0
  %v545 = vmax.f32 %v542, 0.0
  %v547 = vsel %vm54, %v545, 0
  %549 = vmatprep.subr.mxu0 0.0
  %550 = vmatpush1.msra.mxu0 %v33
  %551 = vmatprep.subr.mxu0 0.0
  %552 = vmatpush1.msra.mxu0 0.0
  %553 = vmatprep.subr.mxu0 0.0
  %554 = vmatpush1.msra.mxu0 0.0
  %555 = vmatprep.subr.mxu0 0.0
  %556 = vmatpush1.msra.mxu0 0.0
  %557 = vmatprep.subr.mxu0 0.0
  %558 = vmatpush1.msra.mxu0 0.0
  %559 = vmatprep.subr.mxu0 0.0
  %560 = vmatpush1.msra.mxu0 0.0
  %561 = vmatprep.subr.mxu0 0.0
  %562 = vmatpush1.msra.mxu0 0.0
  %563 = vmatprep.subr.mxu0 0.0
  %564 = vmatpush1.msra.mxu0 0.0
  %565 = vmatprep.subr.mxu0 0.0
  %566 = vmatpush1.msra.mxu0 0.0
  %567 = vmatprep.subr.mxu0 0.0
  %568 = vmatpush1.msra.mxu0 0.0
  %569 = vmatprep.subr.mxu0 0.0
  %570 = vmatpush1.msra.mxu0 0.0
  %571 = vmatprep.subr.mxu0 0.0
  %572 = vmatpush1.msra.mxu0 0.0
  %573 = vmatprep.subr.mxu0 0.0
  %574 = vmatpush1.msra.mxu0 0.0
  %575 = vmatprep.subr.mxu0 0.0
  %576 = vmatpush1.msra.mxu0 0.0
  %577 = vmatprep.subr.mxu0 0.0
  %578 = vmatpush1.msra.mxu0 0.0
  %579 = vmatprep.subr.mxu0 0.0
  %580 = vmatpush1.msra.mxu0 0.0
  %581 = vmatprep.subr.mxu0 0.0
  %582 = vmatpush1.msra.mxu0 0.0
  %583 = vmatprep.subr.mxu0 0.0
  %584 = vmatpush1.msra.mxu0 0.0
  %585 = vmatprep.subr.mxu0 0.0
  %586 = vmatpush1.msra.mxu0 0.0
  %587 = vmatprep.subr.mxu0 0.0
  %588 = vmatpush1.msra.mxu0 0.0
  %589 = vmatprep.subr.mxu0 0.0
  %590 = vmatpush1.msra.mxu0 0.0
  %591 = vmatprep.subr.mxu0 0.0
  %592 = vmatpush1.msra.mxu0 0.0
  %593 = vmatprep.subr.mxu0 0.0
  %594 = vmatpush1.msra.mxu0 0.0
  %595 = vmatprep.subr.mxu0 0.0
  %596 = vmatpush1.msra.mxu0 0.0
  %597 = vmatprep.subr.mxu0 0.0
  %598 = vmatpush1.msra.mxu0 0.0
  %599 = vmatprep.subr.mxu0 0.0
  %600 = vmatpush1.msra.mxu0 0.0
  %601 = vmatprep.subr.mxu0 0.0
  %602 = vmatpush1.msra.mxu0 0.0
  %603 = vmatprep.subr.mxu0 0.0
  %604 = vmatpush1.msra.mxu0 0.0
  %605 = vmatprep.subr.mxu0 0.0
  %606 = vmatpush1.msra.mxu0 0.0
  %607 = vmatprep.subr.mxu0 0.0
  %608 = vmatpush1.msra.mxu0 0.0
  %609 = vmatprep.subr.mxu0 0.0
  %610 = vmatpush1.msra.mxu0 0.0
  %611 = vmatprep.subr.mxu0 0.0
  %612 = vmatpush1.msra.mxu0 0.0
  %613 = vmatprep.mubr.f32.mxu0 0.0
  %614 = vmatmul.mubr.f32.gmra.mrb[0].mxu0 %v547
  %v615 = vpop.f32.mrb[0].mxu0
  %v616 = vadd.f32 0.0, %v615
  %v617 = vpop.f32.mrb[0].mxu0
  %618 = vdwg.mxu0
  %v620 = vsel %vm54, %v381, 0
  %622 = vmatprep.subr.mxu0 0.0
  %623 = vmatpush1.msra.mxu0 %v32
  %624 = vmatprep.subr.mxu0 0.0
  %625 = vmatpush1.msra.mxu0 0.0
  %626 = vmatprep.subr.mxu0 0.0
  %627 = vmatpush1.msra.mxu0 0.0
  %628 = vmatprep.subr.mxu0 0.0
  %629 = vmatpush1.msra.mxu0 0.0
  %630 = vmatprep.subr.mxu0 0.0
  %631 = vmatpush1.msra.mxu0 0.0
  %632 = vmatprep.subr.mxu0 0.0
  %633 = vmatpush1.msra.mxu0 0.0
  %634 = vmatprep.subr.mxu0 0.0
  %635 = vmatpush1.msra.mxu0 0.0
  %636 = vmatprep.subr.mxu0 0.0
  %637 = vmatpush1.msra.mxu0 0.0
  %638 = vmatprep.subr.mxu0 0.0
  %639 = vmatpush1.msra.mxu0 0.0
  %640 = vmatprep.subr.mxu0 0.0
  %641 = vmatpush1.msra.mxu0 0.0
  %642 = vmatprep.subr.mxu0 0.0
  %643 = vmatpush1.msra.mxu0 0.0
  %644 = vmatprep.subr.mxu0 0.0
  %645 = vmatpush1.msra.mxu0 0.0
  %646 = vmatprep.subr.mxu0 0.0
  %647 = vmatpush1.msra.mxu0 0.0
  %648 = vmatprep.subr.mxu0 0.0
  %649 = vmatpush1.msra.mxu0 0.0
  %650 = vmatprep.subr.mxu0 0.0
  %651 = vmatpush1.msra.mxu0 0.0
  %652 = vmatprep.subr.mxu0 0.0
  %653 = vmatpush1.msra.mxu0 0.0
  %654 = vmatprep.subr.mxu0 0.0
  %655 = vmatpush1.msra.mxu0 0.0
  %656 = vmatprep.subr.mxu0 0.0
  %657 = vmatpush1.msra.mxu0 0.0
  %658 = vmatprep.subr.mxu0 0.0
  %659 = vmatpush1.msra.mxu0 0.0
  %660 = vmatprep.subr.mxu0 0.0
  %661 = vmatpush1.msra.mxu0 0.0
  %662 = vmatprep.subr.mxu0 0.0
  %663 = vmatpush1.msra.mxu0 0.0
  %664 = vmatprep.subr.mxu0 0.0
  %665 = vmatpush1.msra.mxu0 0.0
  %666 = vmatprep.subr.mxu0 0.0
  %667 = vmatpush1.msra.mxu0 0.0
  %668 = vmatprep.subr.mxu0 0.0
  %669 = vmatpush1.msra.mxu0 0.0
  %670 = vmatprep.subr.mxu0 0.0
  %671 = vmatpush1.msra.mxu0 0.0
  %672 = vmatprep.subr.mxu0 0.0
  %673 = vmatpush1.msra.mxu0 0.0
  %674 = vmatprep.subr.mxu0 0.0
  %675 = vmatpush1.msra.mxu0 0.0
  %676 = vmatprep.subr.mxu0 0.0
  %677 = vmatpush1.msra.mxu0 0.0
  %678 = vmatprep.subr.mxu0 0.0
  %679 = vmatpush1.msra.mxu0 0.0
  %680 = vmatprep.subr.mxu0 0.0
  %681 = vmatpush1.msra.mxu0 0.0
  %682 = vmatprep.subr.mxu0 0.0
  %683 = vmatpush1.msra.mxu0 0.0
  %684 = vmatprep.subr.mxu0 0.0
  %685 = vmatpush1.msra.mxu0 0.0
  %686 = vmatprep.mubr.f32.mxu0 0.0
  %687 = vmatmul.mubr.f32.gmra.mrb[0].mxu0 %v620
  %v688 = vpop.f32.mrb[0].mxu0
  %v689 = vadd.f32 %v616, %v688
  %v690 = vpop.f32.mrb[0].mxu0
  %691 = vdwg.mxu0
  %v693 = vsel %vm54, %v288, 0
  %695 = vmatprep.subr.mxu0 0.0
  %696 = vmatpush1.msra.mxu0 %v34
  %697 = vmatprep.subr.mxu0 0.0
  %698 = vmatpush1.msra.mxu0 0.0
  %699 = vmatprep.subr.mxu0 0.0
  %700 = vmatpush1.msra.mxu0 0.0
  %701 = vmatprep.subr.mxu0 0.0
  %702 = vmatpush1.msra.mxu0 0.0
  %703 = vmatprep.subr.mxu0 0.0
  %704 = vmatpush1.msra.mxu0 0.0
  %705 = vmatprep.subr.mxu0 0.0
  %706 = vmatpush1.msra.mxu0 0.0
  %707 = vmatprep.subr.mxu0 0.0
  %708 = vmatpush1.msra.mxu0 0.0
  %709 = vmatprep.subr.mxu0 0.0
  %710 = vmatpush1.msra.mxu0 0.0
  %711 = vmatprep.subr.mxu0 0.0
  %712 = vmatpush1.msra.mxu0 0.0
  %713 = vmatprep.subr.mxu0 0.0
  %714 = vmatpush1.msra.mxu0 0.0
  %715 = vmatprep.subr.mxu0 0.0
  %716 = vmatpush1.msra.mxu0 0.0
  %717 = vmatprep.subr.mxu0 0.0
  %718 = vmatpush1.msra.mxu0 0.0
  %719 = vmatprep.subr.mxu0 0.0
  %720 = vmatpush1.msra.mxu0 0.0
  %721 = vmatprep.subr.mxu0 0.0
  %722 = vmatpush1.msra.mxu0 0.0
  %723 = vmatprep.subr.mxu0 0.0
  %724 = vmatpush1.msra.mxu0 0.0
  %725 = vmatprep.subr.mxu0 0.0
  %726 = vmatpush1.msra.mxu0 0.0
  %727 = vmatprep.subr.mxu0 0.0
  %728 = vmatpush1.msra.mxu0 0.0
  %729 = vmatprep.subr.mxu0 0.0
  %730 = vmatpush1.msra.mxu0 0.0
  %731 = vmatprep.subr.mxu0 0.0
  %732 = vmatpush1.msra.mxu0 0.0
  %733 = vmatprep.subr.mxu0 0.0
  %734 = vmatpush1.msra.mxu0 0.0
  %735 = vmatprep.subr.mxu0 0.0
  %736 = vmatpush1.msra.mxu0 0.0
  %737 = vmatprep.subr.mxu0 0.0
  %738 = vmatpush1.msra.mxu0 0.0
  %739 = vmatprep.subr.mxu0 0.0
  %740 = vmatpush1.msra.mxu0 0.0
  %741 = vmatprep.subr.mxu0 0.0
  %742 = vmatpush1.msra.mxu0 0.0
  %743 = vmatprep.subr.mxu0 0.0
  %744 = vmatpush1.msra.mxu0 0.0
  %745 = vmatprep.subr.mxu0 0.0
  %746 = vmatpush1.msra.mxu0 0.0
  %747 = vmatprep.subr.mxu0 0.0
  %748 = vmatpush1.msra.mxu0 0.0
  %749 = vmatprep.subr.mxu0 0.0
  %750 = vmatpush1.msra.mxu0 0.0
  %751 = vmatprep.subr.mxu0 0.0
  %752 = vmatpush1.msra.mxu0 0.0
  %753 = vmatprep.subr.mxu0 0.0
  %754 = vmatpush1.msra.mxu0 0.0
  %755 = vmatprep.subr.mxu0 0.0
  %756 = vmatpush1.msra.mxu0 0.0
  %757 = vmatprep.subr.mxu0 0.0
  %758 = vmatpush1.msra.mxu0 0.0
  %759 = vmatprep.mubr.f32.mxu0 0.0
  %760 = vmatmul.mubr.f32.gmra.mrb[0].mxu0 %v693
  %v761 = vpop.f32.mrb[0].mxu0
  %v762 = vadd.f32 0.0, %v761
  %v763 = vpop.f32.mrb[0].mxu0
  %764 = vdwg.mxu0
  %v765 = vadd.f32 %v689, %v762
  %v766 = vlaneseq
  %v767 = vshrl.u32 %v766, 7
  %v768 = vsub.s32 5, %v767
  %v769 = vrot.slane %v38, %v768
  %v770 = vadd.f32 %v765, %v769
  %v771 = vmax.f32 %v770, 0.0
  %v772 = vlaneseq
  %v773 = vshrl.u32 %v772, 7
  %v774 = vsub.s32 6, %v773
  %v775 = vrot.slane %v38, %v774
  %v777 = vsel %vm54, %v771, 0
  %779 = vmatprep.subr.mxu0 0.0
  %780 = vmatpush1.msra.mxu0 %v35
  %781 = vmatprep.subr.mxu0 0.0
  %782 = vmatpush1.msra.mxu0 0.0
  %783 = vmatprep.subr.mxu0 0.0
  %784 = vmatpush1.msra.mxu0 0.0
  %785 = vmatprep.subr.mxu0 0.0
  %786 = vmatpush1.msra.mxu0 0.0
  %787 = vmatprep.subr.mxu0 0.0
  %788 = vmatpush1.msra.mxu0 0.0
  %789 = vmatprep.subr.mxu0 0.0
  %790 = vmatpush1.msra.mxu0 0.0
  %791 = vmatprep.subr.mxu0 0.0
  %792 = vmatpush1.msra.mxu0 0.0
  %793 = vmatprep.subr.mxu0 0.0
  %794 = vmatpush1.msra.mxu0 0.0
  %795 = vmatprep.subr.mxu0 0.0
  %796 = vmatpush1.msra.mxu0 0.0
  %797 = vmatprep.subr.mxu0 0.0
  %798 = vmatpush1.msra.mxu0 0.0
  %799 = vmatprep.subr.mxu0 0.0
  %800 = vmatpush1.msra.mxu0 0.0
  %801 = vmatprep.subr.mxu0 0.0
  %802 = vmatpush1.msra.mxu0 0.0
  %803 = vmatprep.subr.mxu0 0.0
  %804 = vmatpush1.msra.mxu0 0.0
  %805 = vmatprep.subr.mxu0 0.0
  %806 = vmatpush1.msra.mxu0 0.0
  %807 = vmatprep.subr.mxu0 0.0
  %808 = vmatpush1.msra.mxu0 0.0
  %809 = vmatprep.subr.mxu0 0.0
  %810 = vmatpush1.msra.mxu0 0.0
  %811 = vmatprep.subr.mxu0 0.0
  %812 = vmatpush1.msra.mxu0 0.0
  %813 = vmatprep.subr.mxu0 0.0
  %814 = vmatpush1.msra.mxu0 0.0
  %815 = vmatprep.subr.mxu0 0.0
  %816 = vmatpush1.msra.mxu0 0.0
  %817 = vmatprep.subr.mxu0 0.0
  %818 = vmatpush1.msra.mxu0 0.0
  %819 = vmatprep.subr.mxu0 0.0
  %820 = vmatpush1.msra.mxu0 0.0
  %821 = vmatprep.subr.mxu0 0.0
  %822 = vmatpush1.msra.mxu0 0.0
  %823 = vmatprep.subr.mxu0 0.0
  %824 = vmatpush1.msra.mxu0 0.0
  %825 = vmatprep.subr.mxu0 0.0
  %826 = vmatpush1.msra.mxu0 0.0
  %827 = vmatprep.subr.mxu0 0.0
  %828 = vmatpush1.msra.mxu0 0.0
  %829 = vmatprep.subr.mxu0 0.0
  %830 = vmatpush1.msra.mxu0 0.0
  %831 = vmatprep.subr.mxu0 0.0
  %832 = vmatpush1.msra.mxu0 0.0
  %833 = vmatprep.subr.mxu0 0.0
  %834 = vmatpush1.msra.mxu0 0.0
  %835 = vmatprep.subr.mxu0 0.0
  %836 = vmatpush1.msra.mxu0 0.0
  %837 = vmatprep.subr.mxu0 0.0
  %838 = vmatpush1.msra.mxu0 0.0
  %839 = vmatprep.subr.mxu0 0.0
  %840 = vmatpush1.msra.mxu0 0.0
  %841 = vmatprep.subr.mxu0 0.0
  %842 = vmatpush1.msra.mxu0 0.0
  %843 = vmatprep.mubr.f32.mxu0 0.0
  %844 = vmatmul.mubr.f32.gmra.mrb[0].mxu0 %v777
  %v845 = vpop.f32.mrb[0].mxu0
  %v846 = vadd.f32 %v775, %v845
  %v847 = vpop.f32.mrb[0].mxu0
  %848 = vdwg.mxu0
  %v849 = vmax.f32 %v846, 0.0
  %v850 = vlaneseq
  %v851 = vshrl.u32 %v850, 7
  %v852 = vsub.s32 7, %v851
  %v853 = vrot.slane %v38, %v852
  %v855 = vsel %vm54, %v849, 0
  %857 = vmatprep.subr.mxu0 0.0
  %858 = vmatpush1.msra.mxu0 %v36
  %859 = vmatprep.subr.mxu0 0.0
  %860 = vmatpush1.msra.mxu0 0.0
  %861 = vmatprep.subr.mxu0 0.0
  %862 = vmatpush1.msra.mxu0 0.0
  %863 = vmatprep.subr.mxu0 0.0
  %864 = vmatpush1.msra.mxu0 0.0
  %865 = vmatprep.subr.mxu0 0.0
  %866 = vmatpush1.msra.mxu0 0.0
  %867 = vmatprep.subr.mxu0 0.0
  %868 = vmatpush1.msra.mxu0 0.0
  %869 = vmatprep.subr.mxu0 0.0
  %870 = vmatpush1.msra.mxu0 0.0
  %871 = vmatprep.subr.mxu0 0.0
  %872 = vmatpush1.msra.mxu0 0.0
  %873 = vmatprep.subr.mxu0 0.0
  %874 = vmatpush1.msra.mxu0 0.0
  %875 = vmatprep.subr.mxu0 0.0
  %876 = vmatpush1.msra.mxu0 0.0
  %877 = vmatprep.subr.mxu0 0.0
  %878 = vmatpush1.msra.mxu0 0.0
  %879 = vmatprep.subr.mxu0 0.0
  %880 = vmatpush1.msra.mxu0 0.0
  %881 = vmatprep.subr.mxu0 0.0
  %882 = vmatpush1.msra.mxu0 0.0
  %883 = vmatprep.subr.mxu0 0.0
  %884 = vmatpush1.msra.mxu0 0.0
  %885 = vmatprep.subr.mxu0 0.0
  %886 = vmatpush1.msra.mxu0 0.0
  %887 = vmatprep.subr.mxu0 0.0
  %888 = vmatpush1.msra.mxu0 0.0
  %889 = vmatprep.subr.mxu0 0.0
  %890 = vmatpush1.msra.mxu0 0.0
  %891 = vmatprep.subr.mxu0 0.0
  %892 = vmatpush1.msra.mxu0 0.0
  %893 = vmatprep.subr.mxu0 0.0
  %894 = vmatpush1.msra.mxu0 0.0
  %895 = vmatprep.subr.mxu0 0.0
  %896 = vmatpush1.msra.mxu0 0.0
  %897 = vmatprep.subr.mxu0 0.0
  %898 = vmatpush1.msra.mxu0 0.0
  %899 = vmatprep.subr.mxu0 0.0
  %900 = vmatpush1.msra.mxu0 0.0
  %901 = vmatprep.subr.mxu0 0.0
  %902 = vmatpush1.msra.mxu0 0.0
  %903 = vmatprep.subr.mxu0 0.0
  %904 = vmatpush1.msra.mxu0 0.0
  %905 = vmatprep.subr.mxu0 0.0
  %906 = vmatpush1.msra.mxu0 0.0
  %907 = vmatprep.subr.mxu0 0.0
  %908 = vmatpush1.msra.mxu0 0.0
  %909 = vmatprep.subr.mxu0 0.0
  %910 = vmatpush1.msra.mxu0 0.0
  %911 = vmatprep.subr.mxu0 0.0
  %912 = vmatpush1.msra.mxu0 0.0
  %913 = vmatprep.subr.mxu0 0.0
  %914 = vmatpush1.msra.mxu0 0.0
  %915 = vmatprep.subr.mxu0 0.0
  %916 = vmatpush1.msra.mxu0 0.0
  %917 = vmatprep.subr.mxu0 0.0
  %918 = vmatpush1.msra.mxu0 0.0
  %919 = vmatprep.subr.mxu0 0.0
  %920 = vmatpush1.msra.mxu0 0.0
  %921 = vmatprep.mubr.f32.mxu0 0.0
  %922 = vmatmul.mubr.f32.gmra.mrb[0].mxu0 %v855
  %v923 = vpop.f32.mrb[0].mxu0
  %v924 = vadd.f32 %v853, %v923
  %v925 = vpop.f32.mrb[0].mxu0
  %926 = vdwg.mxu0
  %v927 = vmax.f32 %v924, 0.0
  %v928 = vlaneseq
  %v929 = vshrl.u32 %v928, 7
  %v930 = vsub.s32 0, %v929
  %v931 = vrot.slane %v39, %v930
  %v933 = vsel %vm54, %v927, 0
  %935 = vmatprep.subr.mxu0 0.0
  %936 = vmatpush1.msra.mxu0 %v37
  %937 = vmatprep.subr.mxu0 0.0
  %938 = vmatpush1.msra.mxu0 0.0
  %939 = vmatprep.subr.mxu0 0.0
  %940 = vmatpush1.msra.mxu0 0.0
  %941 = vmatprep.subr.mxu0 0.0
  %942 = vmatpush1.msra.mxu0 0.0
  %943 = vmatprep.subr.mxu0 0.0
  %944 = vmatpush1.msra.mxu0 0.0
  %945 = vmatprep.subr.mxu0 0.0
  %946 = vmatpush1.msra.mxu0 0.0
  %947 = vmatprep.subr.mxu0 0.0
  %948 = vmatpush1.msra.mxu0 0.0
  %949 = vmatprep.subr.mxu0 0.0
  %950 = vmatpush1.msra.mxu0 0.0
  %951 = vmatprep.subr.mxu0 0.0
  %952 = vmatpush1.msra.mxu0 0.0
  %953 = vmatprep.subr.mxu0 0.0
  %954 = vmatpush1.msra.mxu0 0.0
  %955 = vmatprep.subr.mxu0 0.0
  %956 = vmatpush1.msra.mxu0 0.0
  %957 = vmatprep.subr.mxu0 0.0
  %958 = vmatpush1.msra.mxu0 0.0
  %959 = vmatprep.subr.mxu0 0.0
  %960 = vmatpush1.msra.mxu0 0.0
  %961 = vmatprep.subr.mxu0 0.0
  %962 = vmatpush1.msra.mxu0 0.0
  %963 = vmatprep.subr.mxu0 0.0
  %964 = vmatpush1.msra.mxu0 0.0
  %965 = vmatprep.subr.mxu0 0.0
  %966 = vmatpush1.msra.mxu0 0.0
  %967 = vmatprep.subr.mxu0 0.0
  %968 = vmatpush1.msra.mxu0 0.0
  %969 = vmatprep.subr.mxu0 0.0
  %970 = vmatpush1.msra.mxu0 0.0
  %971 = vmatprep.subr.mxu0 0.0
  %972 = vmatpush1.msra.mxu0 0.0
  %973 = vmatprep.subr.mxu0 0.0
  %974 = vmatpush1.msra.mxu0 0.0
  %975 = vmatprep.subr.mxu0 0.0
  %976 = vmatpush1.msra.mxu0 0.0
  %977 = vmatprep.subr.mxu0 0.0
  %978 = vmatpush1.msra.mxu0 0.0
  %979 = vmatprep.subr.mxu0 0.0
  %980 = vmatpush1.msra.mxu0 0.0
  %981 = vmatprep.subr.mxu0 0.0
  %982 = vmatpush1.msra.mxu0 0.0
  %983 = vmatprep.subr.mxu0 0.0
  %984 = vmatpush1.msra.mxu0 0.0
  %985 = vmatprep.subr.mxu0 0.0
  %986 = vmatpush1.msra.mxu0 0.0
  %987 = vmatprep.subr.mxu0 0.0
  %988 = vmatpush1.msra.mxu0 0.0
  %989 = vmatprep.subr.mxu0 0.0
  %990 = vmatpush1.msra.mxu0 0.0
  %991 = vmatprep.subr.mxu0 0.0
  %992 = vmatpush1.msra.mxu0 0.0
  %993 = vmatprep.subr.mxu0 0.0
  %994 = vmatpush1.msra.mxu0 0.0
  %995 = vmatprep.subr.mxu0 0.0
  %996 = vmatpush1.msra.mxu0 0.0
  %997 = vmatprep.subr.mxu0 0.0
  %998 = vmatpush1.msra.mxu0 0.0
  %999 = vmatprep.mubr.f32.mxu0 0.0
  %1000 = vmatmul.mubr.f32.gmra.mrb[0].mxu0 %v933
  %v1001 = vpop.f32.mrb[0].mxu0
  %v1002 = vadd.f32 %v931, %v1001
  %v1003 = vpop.f32.mrb[0].mxu0
  %1004 = vdwg.mxu0
  %v1005 = vsub.f32 0.0, %v1002
  %v1006 = vmul.f32 %v1005, 1.442695
  %v1007 = vpow.pop %v1006
  %v1008 = vadd.f32 %v1007, 1.0
  %v1009 = vrcp.pop %v1008
  %v1010 = vmul.f32 1.0, %v1009
  %vm1011 = vcmask 7168
  %1012 = vst.msk [vmem:[%s6] sm:$0xff] %vm1011, %v1010
  %1013 = vst.msk [vmem:[%s7] sm:$0xff] %vm1011, 1.0
  // Predicated region
  $region26: #{tpu_custom_call.1} parent=0 // pred_check
    _
  $region27: #{tpu_custom_call.1} parent=0 // pred_check_branch
    %1015 = sbr.rel (0) target = $region29
  $region28: #{tpu_custom_call.1} parent=0 // pred_region
    _
  $region29: #{tpu_custom_call.1} parent=0 // pred_fallthru
    _
  // Predicated region
  $region30: #{tpu_custom_call.1} parent=0 // pred_check
    _
  $region31: #{tpu_custom_call.1} parent=0 // pred_check_branch
    %1017 = sbr.rel (0) target = $region33
  $region32: #{tpu_custom_call.1} parent=0 // pred_region
    _
  $region33: #{tpu_custom_call.1} parent=0 // pred_fallthru
    _
  // Predicated region
  $region34: #{tpu_custom_call.1} parent=0 // pred_check
    _
  $region35: #{tpu_custom_call.1} parent=0 // pred_check_branch
    %1019 = sbr.rel (0) target = $region37
  $region36: #{tpu_custom_call.1} parent=0 // pred_region
    _
  $region37: #{tpu_custom_call.1} parent=0 // pred_fallthru
    _
  // Predicated region
  $region38: #{tpu_custom_call.1} parent=0 // pred_check
    _
  $region39: #{tpu_custom_call.1} parent=0 // pred_check_branch
    %1021 = sbr.rel (0) target = $region41
  $region40: #{tpu_custom_call.1} parent=0 // pred_region
    _
  $region41: #{tpu_custom_call.1} parent=0 // pred_fallthru
    _

</llo_original>
